<compile_context>
chip_gen: v5e
topology: v5e:2x2
jax: 0.10.0
libtpu: 0.0.40
codegen_flags: <defaults>
</compile_context>

<pallas_src>
import functools

import jax
import jax.numpy as jnp
import numpy as np
from jax.experimental import pallas as pl
from jax.experimental.pallas import tpu as pltpu


def _mha_kernel(x_ref, wqkv_ref, bqkv_ref, wp_ref, bp_ref, o_ref, cat_ref, *,
                n_heads, seq_len, embed_size, head_dim):
    """One grid step = one batch element. All heads computed in-kernel."""
    E = embed_size
    x = x_ref[0]                                   # (S, E) bf16

    # ---- fused QKV projection: one wide matmul, f32 accumulation ----------
    qkv = jnp.dot(x, wqkv_ref[...],
                  preferred_element_type=jnp.float32) + bqkv_ref[...]  # (S, 3E) f32

    # PyTorch module divides scores by embed_size**0.5 (not head_dim**0.5);
    # fold that scale into q once (O(S*E) instead of O(S^2) per head).
    scale = 1.0 / (float(embed_size) ** 0.5)
    q_all = (qkv[:, 0 * E:1 * E] * scale).astype(jnp.bfloat16)   # (S, E)
    k_all = qkv[:, 1 * E:2 * E].astype(jnp.bfloat16)             # (S, E)
    v_all = qkv[:, 2 * E:3 * E].astype(jnp.bfloat16)             # (S, E)

    # ---- causal mask generated in-kernel (no HBM mask input) --------------
    row = jax.lax.broadcasted_iota(jnp.int32, (seq_len, seq_len), 0)
    col = jax.lax.broadcasted_iota(jnp.int32, (seq_len, seq_len), 1)
    causal = row >= col                            # (S, S) bool

    # ---- per-head attention; head outputs go into the concat scratch ------
    # H is small & static; loop is fully unrolled at trace time and each
    # iteration's temporaries die at the scratch store.
    for h in range(n_heads):
        lo, hi = h * head_dim, (h + 1) * head_dim
        q = q_all[:, lo:hi]                        # (S, D) bf16
        k = k_all[:, lo:hi]                        # (S, D) bf16
        v = v_all[:, lo:hi]                        # (S, D) bf16

        scores = jnp.dot(q, k.T, preferred_element_type=jnp.float32)  # (S, S) f32
        scores = jnp.where(causal, scores, -jnp.inf)

        m = jnp.max(scores, axis=-1, keepdims=True)        # (S, 1) f32
        p = jnp.exp(scores - m)                            # unnormalized probs
        l = jnp.sum(p, axis=-1, keepdims=True)             # (S, 1) f32

        head_out = jnp.dot(p.astype(jnp.bfloat16), v,
                           preferred_element_type=jnp.float32)         # (S, D) f32
        # Deferred softmax normalization: O(S*D) EUP reciprocal + VPU mul.
        head_out = head_out * pl.reciprocal(l, approx=True)

        cat_ref[:, lo:hi] = head_out.astype(jnp.bfloat16)

    # ---- single full-width output projection -------------------------------
    out = jnp.dot(cat_ref[...], wp_ref[...],
                  preferred_element_type=jnp.float32) + bp_ref[...]
    o_ref[0] = out.astype(o_ref.dtype)


def multi_head_attention(x, params, *, n_heads):
    """x: (B, S, E) float32; params: dict with fused bf16 weights."""
    B, S, E = x.shape
    D = E // n_heads

    kernel = functools.partial(_mha_kernel, n_heads=n_heads, seq_len=S,
                               embed_size=E, head_dim=D)

    return pl.pallas_call(
        kernel,
        out_shape=jax.ShapeDtypeStruct((B, S, E), jnp.float32),
        grid_spec=pltpu.PrefetchScalarGridSpec(
            num_scalar_prefetch=0,
            grid=(B,),
            in_specs=[
                pl.BlockSpec((1, S, E), lambda b: (b, 0, 0)),    # x (bf16)
                pl.BlockSpec((E, 3 * E), lambda b: (0, 0)),      # Wqkv (bf16)
                pl.BlockSpec((1, 3 * E), lambda b: (0, 0)),      # bqkv (f32)
                pl.BlockSpec((E, E), lambda b: (0, 0)),          # Wproj (bf16)
                pl.BlockSpec((1, E), lambda b: (0, 0)),          # bproj (f32)
            ],
            out_specs=pl.BlockSpec((1, S, E), lambda b: (b, 0, 0)),
            scratch_shapes=[pltpu.VMEM((S, E), jnp.bfloat16)],   # concat buffer
        ),
        compiler_params=pltpu.CompilerParams(
            dimension_semantics=("parallel",)),
    )(x.astype(jnp.bfloat16), params["wqkv"], params["bqkv"],
      params["wp"], params["bp"])


# ---------------------------------------------------------------------------
# Deterministic parameter construction (mirrors the module's __init__ shapes).
# ---------------------------------------------------------------------------
def xavier_uniform(key, fan_in, fan_out, shape):
    bound = float(np.sqrt(6.0 / (fan_in + fan_out)))
    return jax.random.uniform(key, shape, jnp.float32, -bound, bound)


def init_params(key, n_heads, embed_size):
    D = embed_size // n_heads
    E = embed_size
    keys = jax.random.split(key, 8)

    # Per-head linears: torch weight is (out=D, in=E); kernel layout is (E, D).
    wq = xavier_uniform(keys[0], E, D, (n_heads, E, D))
    wk = xavier_uniform(keys[1], E, D, (n_heads, E, D))
    wv = xavier_uniform(keys[2], E, D, (n_heads, E, D))
    bnd = 1.0 / float(np.sqrt(E))
    bq = jax.random.uniform(keys[3], (n_heads, 1, D), jnp.float32, -bnd, bnd)
    bk = jax.random.uniform(keys[4], (n_heads, 1, D), jnp.float32, -bnd, bnd)
    bv = jax.random.uniform(keys[5], (n_heads, 1, D), jnp.float32, -bnd, bnd)

    # Projection: torch weight (E, H*D); kernel layout (H*D, E) == (E, E).
    pbnd = 1.0 / float(np.sqrt(n_heads * D))
    wp = jax.random.uniform(keys[6], (n_heads * D, E), jnp.float32, -pbnd, pbnd)
    bp = jax.random.uniform(keys[7], (1, E), jnp.float32, -pbnd, pbnd)

    per_head = dict(wq=wq, bq=bq, wk=wk, bk=bk, wv=wv, bv=bv, wp=wp, bp=bp)

    # Fused layouts for the kernel: columns [h*D:(h+1)*D] belong to head h.
    def fuse_w(w):        # (H, E, D) -> (E, H*D)
        return jnp.moveaxis(w, 0, 1).reshape(E, n_heads * D)

    def fuse_b(b):        # (H, 1, D) -> (1, H*D)
        return b.reshape(n_heads * D)[None, :]

    wqkv = jnp.concatenate([fuse_w(wq), fuse_w(wk), fuse_w(wv)], axis=1)
    bqkv = jnp.concatenate([fuse_b(bq), fuse_b(bk), fuse_b(bv)], axis=1)

    fused = dict(wqkv=wqkv.astype(jnp.bfloat16),
                 bqkv=bqkv.astype(jnp.float32),
                 wp=wp.astype(jnp.bfloat16),
                 bp=bp.astype(jnp.float32))
    return per_head, fused


def reference(x, p, n_heads):
    """Pure-JAX f32 reference matching the PyTorch forward."""
    B, S, E = x.shape
    mask = jnp.tril(jnp.ones((S, S), jnp.float32))
    outs = []
    for h in range(n_heads):
        q = x @ p["wq"][h] + p["bq"][h]
        k = x @ p["wk"][h] + p["bk"][h]
        v = x @ p["wv"][h] + p["bv"][h]
        att = jnp.einsum("bqd,bkd->bqk", q, k) / (E ** 0.5)
        att = jnp.where(mask[None] == 0, -jnp.inf, att)
        att = jax.nn.softmax(att, axis=-1)
        outs.append(jnp.einsum("bqk,bkd->bqd", att, v))
    cat = jnp.concatenate(outs, axis=-1)
    return cat @ p["wp"] + p["bp"]


if __name__ == "__main__":
    B, S, E, H = 2, 8, 32, 4          # batch, seq, embed, heads (head_size=8)
    key = jax.random.PRNGKey(0)
    kx, kp = jax.random.split(key)
    x = jax.random.normal(kx, (B, S, E), jnp.float32)
    per_head_params, fused_params = init_params(kp, H, E)

    out = multi_head_attention(x, fused_params, n_heads=H)
    out = jax.block_until_ready(out)

    ref = reference(x, per_head_params, H)
    # bf16 matmul operands + approx reciprocal -> loose-ish tolerance.
    np.testing.assert_allclose(np.asarray(out), np.asarray(ref),
                               rtol=2e-2, atol=2e-2)
    print("KERNEL_OK")
</pallas_src>

<mosaic_0001>
module attributes {stable_mosaic.version = 11 : i64} {
  func.func @_mha_kernel(%arg0: i32, %arg1: memref<1x8x32xbf16, #tpu.memory_space<vmem>>, %arg2: memref<32x96xbf16, #tpu.memory_space<vmem>>, %arg3: memref<1x96xf32, #tpu.memory_space<vmem>>, %arg4: memref<32x32xbf16, #tpu.memory_space<vmem>>, %arg5: memref<1x32xf32, #tpu.memory_space<vmem>>, %arg6: memref<1x8x32xf32, #tpu.memory_space<vmem>>, %arg7: memref<8x32xbf16, #tpu.memory_space<vmem>>) attributes {dimension_semantics = [#tpu.dimension_semantics<parallel>], iteration_bounds = array<i64: 2>, scalar_prefetch = 0 : i64, scratch_operands = 1 : i64, tpu.core_type = #tpu.core_type<tc>, window_params = [{transform_indices = @transform_0, window_bounds = array<i64: 1, 8, 32>}, {pipeline_mode = #tpu.pipeline_mode<synchronous>, transform_indices = @transform_1, window_bounds = array<i64: 32, 96>}, {pipeline_mode = #tpu.pipeline_mode<synchronous>, transform_indices = @transform_2, window_bounds = array<i64: 1, 96>}, {pipeline_mode = #tpu.pipeline_mode<synchronous>, transform_indices = @transform_3, window_bounds = array<i64: 32, 32>}, {pipeline_mode = #tpu.pipeline_mode<synchronous>, transform_indices = @transform_4, window_bounds = array<i64: 1, 32>}, {transform_indices = @transform_5, window_bounds = array<i64: 1, 8, 32>}]} {
    %c0 = arith.constant 0 : index
    %c0_0 = arith.constant 0 : index
    %c0_1 = arith.constant 0 : index
    %0 = vector.load %arg1[%c0, %c0_0, %c0_1] : memref<1x8x32xbf16, #tpu.memory_space<vmem>>, vector<1x8x32xbf16>
    %1 = vector.shape_cast %0 : vector<1x8x32xbf16> to vector<8x32xbf16>
    %c0_2 = arith.constant 0 : index
    %c0_3 = arith.constant 0 : index
    %2 = vector.load %arg2[%c0_2, %c0_3] : memref<32x96xbf16, #tpu.memory_space<vmem>>, vector<32x96xbf16>
    %cst = arith.constant dense<0.000000e+00> : vector<8x96xf32>
    %3 = tpu.matmul %1, %2, %cst {dimension_numbers = #tpu.dot_dimension_numbers<[1], [0], [0], [1], [0, 0, 1, 1], [], []>} : vector<8x32xbf16>, vector<32x96xbf16>, vector<8x96xf32> -> vector<8x96xf32>
    %c0_4 = arith.constant 0 : index
    %c0_5 = arith.constant 0 : index
    %4 = vector.load %arg3[%c0_4, %c0_5] : memref<1x96xf32, #tpu.memory_space<vmem>>, vector<1x96xf32>
    %5 = vector.broadcast %4 : vector<1x96xf32> to vector<8x96xf32>
    %6 = arith.addf %3, %5 : vector<8x96xf32>
    %7 = vector.extract_strided_slice %6 {offsets = [0, 0], sizes = [8, 32], strides = [1, 1]} : vector<8x96xf32> to vector<8x32xf32>
    %cst_6 = arith.constant 0.176776692 : f32
    %8 = vector.broadcast %cst_6 : f32 to vector<8x32xf32>
    %9 = arith.mulf %7, %8 : vector<8x32xf32>
    %10 = arith.truncf %9 : vector<8x32xf32> to vector<8x32xbf16>
    %11 = vector.extract_strided_slice %6 {offsets = [0, 32], sizes = [8, 32], strides = [1, 1]} : vector<8x96xf32> to vector<8x32xf32>
    %12 = arith.truncf %11 : vector<8x32xf32> to vector<8x32xbf16>
    %13 = vector.extract_strided_slice %6 {offsets = [0, 64], sizes = [8, 32], strides = [1, 1]} : vector<8x96xf32> to vector<8x32xf32>
    %14 = arith.truncf %13 : vector<8x32xf32> to vector<8x32xbf16>
    %15 = tpu.iota {dimensions = array<i32: 0>} : vector<8x8xi32>
    %16 = tpu.iota {dimensions = array<i32: 1>} : vector<8x8xi32>
    %17 = arith.cmpi sge, %15, %16 : vector<8x8xi32>
    %18 = vector.extract_strided_slice %10 {offsets = [0, 0], sizes = [8, 8], strides = [1, 1]} : vector<8x32xbf16> to vector<8x8xbf16>
    %19 = vector.extract_strided_slice %12 {offsets = [0, 0], sizes = [8, 8], strides = [1, 1]} : vector<8x32xbf16> to vector<8x8xbf16>
    %20 = vector.extract_strided_slice %14 {offsets = [0, 0], sizes = [8, 8], strides = [1, 1]} : vector<8x32xbf16> to vector<8x8xbf16>
    %21 = tpu.transpose %19, [1, 0] : vector<8x8xbf16> -> vector<8x8xbf16>
    %cst_7 = arith.constant dense<0.000000e+00> : vector<8x8xf32>
    %22 = tpu.matmul %18, %21, %cst_7 {dimension_numbers = #tpu.dot_dimension_numbers<[1], [0], [0], [1], [0, 0, 1, 1], [], []>} : vector<8x8xbf16>, vector<8x8xbf16>, vector<8x8xf32> -> vector<8x8xf32>
    %cst_8 = arith.constant 0xFF800000 : f32
    %23 = vector.broadcast %cst_8 : f32 to vector<8x8xf32>
    %24 = arith.select %17, %22, %23 : vector<8x8xi1>, vector<8x8xf32>
    %cst_9 = arith.constant dense<0xFF800000> : vector<8xf32>
    %25 = vector.multi_reduction <maximumf>, %24, %cst_9 [1] : vector<8x8xf32> to vector<8xf32>
    %26 = vector.shape_cast %25 : vector<8xf32> to vector<8x1xf32>
    %27 = vector.broadcast %26 : vector<8x1xf32> to vector<8x8xf32>
    %28 = arith.subf %24, %27 : vector<8x8xf32>
    %29 = math.exp %28 : vector<8x8xf32>
    %cst_10 = arith.constant dense<0.000000e+00> : vector<8xf32>
    %30 = vector.multi_reduction <add>, %29, %cst_10 [1] : vector<8x8xf32> to vector<8xf32>
    %31 = vector.shape_cast %30 : vector<8xf32> to vector<8x1xf32>
    %32 = arith.truncf %29 : vector<8x8xf32> to vector<8x8xbf16>
    %cst_11 = arith.constant dense<0.000000e+00> : vector<8x8xf32>
    %33 = tpu.matmul %32, %20, %cst_11 {dimension_numbers = #tpu.dot_dimension_numbers<[1], [0], [0], [1], [0, 0, 1, 1], [], []>} : vector<8x8xbf16>, vector<8x8xbf16>, vector<8x8xf32> -> vector<8x8xf32>
    %34 = tpu.reciprocal %31 {approx = true} : vector<8x1xf32> -> vector<8x1xf32>
    %35 = vector.broadcast %34 : vector<8x1xf32> to vector<8x8xf32>
    %36 = arith.mulf %33, %35 : vector<8x8xf32>
    %37 = arith.truncf %36 : vector<8x8xf32> to vector<8x8xbf16>
    %c0_12 = arith.constant 0 : index
    %c0_13 = arith.constant 0 : index
    %38 = vector.load %arg7[%c0_12, %c0_13] : memref<8x32xbf16, #tpu.memory_space<vmem>>, vector<8x8xbf16>
    tpu.vector_store %arg7[%c0_12, %c0_13], %37 {strides = array<i32>} : memref<8x32xbf16, #tpu.memory_space<vmem>>, vector<8x8xbf16>,
    %39 = vector.extract_strided_slice %10 {offsets = [0, 8], sizes = [8, 8], strides = [1, 1]} : vector<8x32xbf16> to vector<8x8xbf16>
    %40 = vector.extract_strided_slice %12 {offsets = [0, 8], sizes = [8, 8], strides = [1, 1]} : vector<8x32xbf16> to vector<8x8xbf16>
    %41 = vector.extract_strided_slice %14 {offsets = [0, 8], sizes = [8, 8], strides = [1, 1]} : vector<8x32xbf16> to vector<8x8xbf16>
    %42 = tpu.transpose %40, [1, 0] : vector<8x8xbf16> -> vector<8x8xbf16>
    %cst_14 = arith.constant dense<0.000000e+00> : vector<8x8xf32>
    %43 = tpu.matmul %39, %42, %cst_14 {dimension_numbers = #tpu.dot_dimension_numbers<[1], [0], [0], [1], [0, 0, 1, 1], [], []>} : vector<8x8xbf16>, vector<8x8xbf16>, vector<8x8xf32> -> vector<8x8xf32>
    %cst_15 = arith.constant 0xFF800000 : f32
    %44 = vector.broadcast %cst_15 : f32 to vector<8x8xf32>
    %45 = arith.select %17, %43, %44 : vector<8x8xi1>, vector<8x8xf32>
    %cst_16 = arith.constant dense<0xFF800000> : vector<8xf32>
    %46 = vector.multi_reduction <maximumf>, %45, %cst_16 [1] : vector<8x8xf32> to vector<8xf32>
    %47 = vector.shape_cast %46 : vector<8xf32> to vector<8x1xf32>
    %48 = vector.broadcast %47 : vector<8x1xf32> to vector<8x8xf32>
    %49 = arith.subf %45, %48 : vector<8x8xf32>
    %50 = math.exp %49 : vector<8x8xf32>
    %cst_17 = arith.constant dense<0.000000e+00> : vector<8xf32>
    %51 = vector.multi_reduction <add>, %50, %cst_17 [1] : vector<8x8xf32> to vector<8xf32>
    %52 = vector.shape_cast %51 : vector<8xf32> to vector<8x1xf32>
    %53 = arith.truncf %50 : vector<8x8xf32> to vector<8x8xbf16>
    %cst_18 = arith.constant dense<0.000000e+00> : vector<8x8xf32>
    %54 = tpu.matmul %53, %41, %cst_18 {dimension_numbers = #tpu.dot_dimension_numbers<[1], [0], [0], [1], [0, 0, 1, 1], [], []>} : vector<8x8xbf16>, vector<8x8xbf16>, vector<8x8xf32> -> vector<8x8xf32>
    %55 = tpu.reciprocal %52 {approx = true} : vector<8x1xf32> -> vector<8x1xf32>
    %56 = vector.broadcast %55 : vector<8x1xf32> to vector<8x8xf32>
    %57 = arith.mulf %54, %56 : vector<8x8xf32>
    %58 = arith.truncf %57 : vector<8x8xf32> to vector<8x8xbf16>
    %c0_19 = arith.constant 0 : index
    %c8 = arith.constant 8 : index
    %59 = vector.load %arg7[%c0_19, %c8] : memref<8x32xbf16, #tpu.memory_space<vmem>>, vector<8x8xbf16>
    tpu.vector_store %arg7[%c0_19, %c8], %58 {strides = array<i32>} : memref<8x32xbf16, #tpu.memory_space<vmem>>, vector<8x8xbf16>,
    %60 = vector.extract_strided_slice %10 {offsets = [0, 16], sizes = [8, 8], strides = [1, 1]} : vector<8x32xbf16> to vector<8x8xbf16>
    %61 = vector.extract_strided_slice %12 {offsets = [0, 16], sizes = [8, 8], strides = [1, 1]} : vector<8x32xbf16> to vector<8x8xbf16>
    %62 = vector.extract_strided_slice %14 {offsets = [0, 16], sizes = [8, 8], strides = [1, 1]} : vector<8x32xbf16> to vector<8x8xbf16>
    %63 = tpu.transpose %61, [1, 0] : vector<8x8xbf16> -> vector<8x8xbf16>
    %cst_20 = arith.constant dense<0.000000e+00> : vector<8x8xf32>
    %64 = tpu.matmul %60, %63, %cst_20 {dimension_numbers = #tpu.dot_dimension_numbers<[1], [0], [0], [1], [0, 0, 1, 1], [], []>} : vector<8x8xbf16>, vector<8x8xbf16>, vector<8x8xf32> -> vector<8x8xf32>
    %cst_21 = arith.constant 0xFF800000 : f32
    %65 = vector.broadcast %cst_21 : f32 to vector<8x8xf32>
    %66 = arith.select %17, %64, %65 : vector<8x8xi1>, vector<8x8xf32>
    %cst_22 = arith.constant dense<0xFF800000> : vector<8xf32>
    %67 = vector.multi_reduction <maximumf>, %66, %cst_22 [1] : vector<8x8xf32> to vector<8xf32>
    %68 = vector.shape_cast %67 : vector<8xf32> to vector<8x1xf32>
    %69 = vector.broadcast %68 : vector<8x1xf32> to vector<8x8xf32>
    %70 = arith.subf %66, %69 : vector<8x8xf32>
    %71 = math.exp %70 : vector<8x8xf32>
    %cst_23 = arith.constant dense<0.000000e+00> : vector<8xf32>
    %72 = vector.multi_reduction <add>, %71, %cst_23 [1] : vector<8x8xf32> to vector<8xf32>
    %73 = vector.shape_cast %72 : vector<8xf32> to vector<8x1xf32>
    %74 = arith.truncf %71 : vector<8x8xf32> to vector<8x8xbf16>
    %cst_24 = arith.constant dense<0.000000e+00> : vector<8x8xf32>
    %75 = tpu.matmul %74, %62, %cst_24 {dimension_numbers = #tpu.dot_dimension_numbers<[1], [0], [0], [1], [0, 0, 1, 1], [], []>} : vector<8x8xbf16>, vector<8x8xbf16>, vector<8x8xf32> -> vector<8x8xf32>
    %76 = tpu.reciprocal %73 {approx = true} : vector<8x1xf32> -> vector<8x1xf32>
    %77 = vector.broadcast %76 : vector<8x1xf32> to vector<8x8xf32>
    %78 = arith.mulf %75, %77 : vector<8x8xf32>
    %79 = arith.truncf %78 : vector<8x8xf32> to vector<8x8xbf16>
    %c0_25 = arith.constant 0 : index
    %c16 = arith.constant 16 : index
    %80 = vector.load %arg7[%c0_25, %c16] : memref<8x32xbf16, #tpu.memory_space<vmem>>, vector<8x8xbf16>
    tpu.vector_store %arg7[%c0_25, %c16], %79 {strides = array<i32>} : memref<8x32xbf16, #tpu.memory_space<vmem>>, vector<8x8xbf16>,
    %81 = vector.extract_strided_slice %10 {offsets = [0, 24], sizes = [8, 8], strides = [1, 1]} : vector<8x32xbf16> to vector<8x8xbf16>
    %82 = vector.extract_strided_slice %12 {offsets = [0, 24], sizes = [8, 8], strides = [1, 1]} : vector<8x32xbf16> to vector<8x8xbf16>
    %83 = vector.extract_strided_slice %14 {offsets = [0, 24], sizes = [8, 8], strides = [1, 1]} : vector<8x32xbf16> to vector<8x8xbf16>
    %84 = tpu.transpose %82, [1, 0] : vector<8x8xbf16> -> vector<8x8xbf16>
    %cst_26 = arith.constant dense<0.000000e+00> : vector<8x8xf32>
    %85 = tpu.matmul %81, %84, %cst_26 {dimension_numbers = #tpu.dot_dimension_numbers<[1], [0], [0], [1], [0, 0, 1, 1], [], []>} : vector<8x8xbf16>, vector<8x8xbf16>, vector<8x8xf32> -> vector<8x8xf32>
    %cst_27 = arith.constant 0xFF800000 : f32
    %86 = vector.broadcast %cst_27 : f32 to vector<8x8xf32>
    %87 = arith.select %17, %85, %86 : vector<8x8xi1>, vector<8x8xf32>
    %cst_28 = arith.constant dense<0xFF800000> : vector<8xf32>
    %88 = vector.multi_reduction <maximumf>, %87, %cst_28 [1] : vector<8x8xf32> to vector<8xf32>
    %89 = vector.shape_cast %88 : vector<8xf32> to vector<8x1xf32>
    %90 = vector.broadcast %89 : vector<8x1xf32> to vector<8x8xf32>
    %91 = arith.subf %87, %90 : vector<8x8xf32>
    %92 = math.exp %91 : vector<8x8xf32>
    %cst_29 = arith.constant dense<0.000000e+00> : vector<8xf32>
    %93 = vector.multi_reduction <add>, %92, %cst_29 [1] : vector<8x8xf32> to vector<8xf32>
    %94 = vector.shape_cast %93 : vector<8xf32> to vector<8x1xf32>
    %95 = arith.truncf %92 : vector<8x8xf32> to vector<8x8xbf16>
    %cst_30 = arith.constant dense<0.000000e+00> : vector<8x8xf32>
    %96 = tpu.matmul %95, %83, %cst_30 {dimension_numbers = #tpu.dot_dimension_numbers<[1], [0], [0], [1], [0, 0, 1, 1], [], []>} : vector<8x8xbf16>, vector<8x8xbf16>, vector<8x8xf32> -> vector<8x8xf32>
    %97 = tpu.reciprocal %94 {approx = true} : vector<8x1xf32> -> vector<8x1xf32>
    %98 = vector.broadcast %97 : vector<8x1xf32> to vector<8x8xf32>
    %99 = arith.mulf %96, %98 : vector<8x8xf32>
    %100 = arith.truncf %99 : vector<8x8xf32> to vector<8x8xbf16>
    %c0_31 = arith.constant 0 : index
    %c24 = arith.constant 24 : index
    %101 = vector.load %arg7[%c0_31, %c24] : memref<8x32xbf16, #tpu.memory_space<vmem>>, vector<8x8xbf16>
    tpu.vector_store %arg7[%c0_31, %c24], %100 {strides = array<i32>} : memref<8x32xbf16, #tpu.memory_space<vmem>>, vector<8x8xbf16>,
    %c0_32 = arith.constant 0 : index
    %c0_33 = arith.constant 0 : index
    %102 = vector.load %arg7[%c0_32, %c0_33] : memref<8x32xbf16, #tpu.memory_space<vmem>>, vector<8x32xbf16>
    %c0_34 = arith.constant 0 : index
    %c0_35 = arith.constant 0 : index
    %103 = vector.load %arg4[%c0_34, %c0_35] : memref<32x32xbf16, #tpu.memory_space<vmem>>, vector<32x32xbf16>
    %cst_36 = arith.constant dense<0.000000e+00> : vector<8x32xf32>
    %104 = tpu.matmul %102, %103, %cst_36 {dimension_numbers = #tpu.dot_dimension_numbers<[1], [0], [0], [1], [0, 0, 1, 1], [], []>} : vector<8x32xbf16>, vector<32x32xbf16>, vector<8x32xf32> -> vector<8x32xf32>
    %c0_37 = arith.constant 0 : index
    %c0_38 = arith.constant 0 : index
    %105 = vector.load %arg5[%c0_37, %c0_38] : memref<1x32xf32, #tpu.memory_space<vmem>>, vector<1x32xf32>
    %106 = vector.broadcast %105 : vector<1x32xf32> to vector<8x32xf32>
    %107 = arith.addf %104, %106 : vector<8x32xf32>
    %c0_39 = arith.constant 0 : index
    %c0_40 = arith.constant 0 : index
    %c0_41 = arith.constant 0 : index
    %108 = vector.load %arg6[%c0_39, %c0_40, %c0_41] : memref<1x8x32xf32, #tpu.memory_space<vmem>>, vector<1x8x32xf32>
    %109 = vector.shape_cast %108 : vector<1x8x32xf32> to vector<8x32xf32>
    %110 = vector.shape_cast %107 : vector<8x32xf32> to vector<1x8x32xf32>
    tpu.vector_store %arg6[%c0_39, %c0_40, %c0_41], %110 {strides = array<i32>} : memref<1x8x32xf32, #tpu.memory_space<vmem>>, vector<1x8x32xf32>,
    return
  }
  func.func @transform_0(%arg0: i32) -> (i32, i32, i32) {
    %c0_i32 = arith.constant 0 : i32
    %c0_i32_0 = arith.constant 0 : i32
    %c0_i32_1 = arith.constant 0 : i32
    return %arg0, %c0_i32, %c0_i32_0 : i32, i32, i32
  }
  func.func @transform_1(%arg0: i32) -> (i32, i32) {
    %c0_i32 = arith.constant 0 : i32
    %c0_i32_0 = arith.constant 0 : i32
    %c0_i32_1 = arith.constant 0 : i32
    return %c0_i32, %c0_i32_0 : i32, i32
  }
  func.func @transform_2(%arg0: i32) -> (i32, i32) {
    %c0_i32 = arith.constant 0 : i32
    %c0_i32_0 = arith.constant 0 : i32
    %c0_i32_1 = arith.constant 0 : i32
    return %c0_i32, %c0_i32_0 : i32, i32
  }
  func.func @transform_3(%arg0: i32) -> (i32, i32) {
    %c0_i32 = arith.constant 0 : i32
    %c0_i32_0 = arith.constant 0 : i32
    %c0_i32_1 = arith.constant 0 : i32
    return %c0_i32, %c0_i32_0 : i32, i32
  }
  func.func @transform_4(%arg0: i32) -> (i32, i32) {
    %c0_i32 = arith.constant 0 : i32
    %c0_i32_0 = arith.constant 0 : i32
    %c0_i32_1 = arith.constant 0 : i32
    return %c0_i32, %c0_i32_0 : i32, i32
  }
  func.func @transform_5(%arg0: i32) -> (i32, i32, i32) {
    %c0_i32 = arith.constant 0 : i32
    %c0_i32_0 = arith.constant 0 : i32
    %c0_i32_1 = arith.constant 0 : i32
    return %arg0, %c0_i32, %c0_i32_0 : i32, i32, i32
  }
}

</mosaic_0001>

<llo_original>
// kernel: tpu_custom_call.1
$region0: #{tpu_custom_call.1}
  #allocation0 [shape = 'u32[]', space=smem, size = 0x4, offset = 0x4, fixed_abs, tag = 'smem constant byte address 0x4 - core index']
  #allocation1 [shape = 'u32[72,128]{1,0:T(1,128)}', space=vmem, size = 0x9000, scoped, tag = 'internal scratch']
  #allocation2 [shape = 'bf16[8,32]{1,0:T(8,128)(2,1)}', space=vmem, size = 0x800, scoped, tag = 'scratch operand']
  %s0 = inlined_call_operand.hbm [shape: bf16[2,8,32], index: 0, kind: input, shape index: {}]
  %s1 = inlined_call_operand.hbm [shape: bf16[32,96], index: 1, kind: input, shape index: {}]
  %s2 = inlined_call_operand.vmem [shape: f32[1,96], index: 2, kind: input, shape index: {}]
  %s3 = inlined_call_operand.hbm [shape: bf16[32,32], index: 3, kind: input, shape index: {}]
  %s4 = inlined_call_operand.vmem [shape: f32[1,32], index: 4, kind: input, shape index: {}]
  %s5 = inlined_call_operand.hbm [shape: f32[2,8,32], index: 5, kind: output, shape index: {}]
  %s6 = sld [smem:[#allocation0]]
  $region65: #{tpu_custom_call.1} parent=0
    _
  %s8 = ssub.s32 1, %s6
  %s9 = scalar_select 0, %s8, %s6
  $region1: #{tpu_custom_call.1} parent=0
    #allocation3 [shape = 'u8[4096]{0}', space=vmem, size = 0x1000, scoped, tag = 'input window, operand 0']
    #allocation4 [shape = 's32[2]{0}', space=sflag, size = 0x8, scoped, tag = 'scoped memory for tpu_custom_call.1']
    #allocation5 [shape = 's32[2]{0}', space=sflag, size = 0x8, scoped, tag = 'scoped memory for tpu_custom_call.1']
    #allocation6 [shape = 'u8[8192]{0}', space=vmem, size = 0x2000, scoped, tag = 'input window, operand 1, single buffered']
    #allocation7 [shape = 's32[1]{0}', space=sflag, size = 0x4, scoped, tag = 'scoped memory for tpu_custom_call.1']
    #allocation8 [shape = 'u8[8192]{0}', space=vmem, size = 0x2000, scoped, tag = 'input window, operand 3, single buffered']
    #allocation9 [shape = 'u8[8192]{0}', space=vmem, size = 0x2000, scoped, tag = 'output window, operand 0']
    %10 = vsyncpa [#allocation4], 0
    %s11 = scalar_lea.sflag [#allocation4], 1
    %12 = vsyncpa %s11, 0
    %13 = vsyncpa [#allocation7], 0
    %14 = vsyncpa [#allocation5], 0
    %s15 = scalar_lea.sflag [#allocation5], 1
    %16 = vsyncpa %s15, 0
    loop: start=0, step=1, limit=4
    $region2: #{tpu_custom_call.1} parent=1 // loop_pre_header
      _
    $region3: #{tpu_custom_call.1} parent=1 // loop_header
      %s18 = sphi 0, %s22
      %p19 = scmp.ge.s32.totalorder %s18, 4
      %s28 = sphi 0, %s30
      %s31 = sphi 0, %s28
      %s32 = sphi 0, %s31
      %s48 = sphi 0, %s32
      %s52 = sphi 0, %s52
      %s54 = sphi 0, %s52
      %s55 = sphi 0, %s54
      %s69 = sphi 0, %s55
      %s73 = sphi 0, %s73
      %s75 = sphi 0, %s73
      %s76 = sphi 0, %s75
      %s90 = sphi 0, %s76
      %s94 = sphi 0, %s94
      %s96 = sphi 0, %s94
      %s97 = sphi 0, %s96
      %s111 = sphi 0, %s97
      %s115 = sphi 0, %s115
      %s117 = sphi 0, %s115
      %s118 = sphi 0, %s117
      %s132 = sphi 0, %s118
      %s138 = sphi 0, %s140
      %s141 = sphi 0, %s138
      %s142 = sphi 0, %s141
      %s158 = sphi 0, %s142
    $region4: #{tpu_custom_call.1} parent=1 // loop_header_branch
      %21 = sbr.rel (%p19) target = $region8
    $region5: #{tpu_custom_call.1} parent=1 // loop_body
      %s23 = ssub.s32 %s18, 1
      %s24 = ssub.s32 %s18, 2
      %s25 = sadd.s32 %s18, 1
      %s26 = ssub.s32 %s18, %s25
      %p27 = scmp.eq.s32.totalorder %s26, 0
      %s29 = sadd.s32 %s28, 1
      %s30 = scalar_select %p27, %s28, %s29
      %p33 = pneg %p27
      %p34 = scmp.eq.s32.totalorder %s18, 1
      %p35 = por %p33, %p34
      %p36 = scmp.ne.s32.totalorder %s28, %s31
      %p37 = scmp.eq.s32.totalorder %s18, 0
      %p38 = por %p36, %p37
      %p39 = scmp.ne.s32.totalorder %s28, %s31
      %p40 = scmp.eq.s32.totalorder %s23, 1
      %p41 = por %p39, %p40
      %p42 = scmp.ne.s32.totalorder %s31, %s32
      %p43 = scmp.eq.s32.totalorder %s23, 0
      %p44 = por %p42, %p43
      %p45 = scmp.ne.s32.totalorder %s31, %s32
      %p46 = scmp.eq.s32.totalorder %s24, 1
      %p47 = por %p45, %p46
      %p49 = scmp.ne.s32.totalorder %s32, %s48
      %p50 = scmp.eq.s32.totalorder %s24, 0
      %p51 = por %p49, %p50
      %s53 = sadd.s32 %s52, 1
      %p56 = scmp.eq.s32.totalorder %s18, 1
      %p57 = scmp.ne.s32.totalorder %s52, %s54
      %p58 = scmp.eq.s32.totalorder %s18, 0
      %p59 = por %p57, %p58
      %p60 = scmp.ne.s32.totalorder %s52, %s54
      %p61 = scmp.eq.s32.totalorder %s23, 1
      %p62 = por %p60, %p61
      %p63 = scmp.ne.s32.totalorder %s54, %s55
      %p64 = scmp.eq.s32.totalorder %s23, 0
      %p65 = por %p63, %p64
      %p66 = scmp.ne.s32.totalorder %s54, %s55
      %p67 = scmp.eq.s32.totalorder %s24, 1
      %p68 = por %p66, %p67
      %p70 = scmp.ne.s32.totalorder %s55, %s69
      %p71 = scmp.eq.s32.totalorder %s24, 0
      %p72 = por %p70, %p71
      %s74 = sadd.s32 %s73, 1
      %p77 = scmp.eq.s32.totalorder %s18, 1
      %p78 = scmp.ne.s32.totalorder %s73, %s75
      %p79 = scmp.eq.s32.totalorder %s18, 0
      %p80 = por %p78, %p79
      %p81 = scmp.ne.s32.totalorder %s73, %s75
      %p82 = scmp.eq.s32.totalorder %s23, 1
      %p83 = por %p81, %p82
      %p84 = scmp.ne.s32.totalorder %s75, %s76
      %p85 = scmp.eq.s32.totalorder %s23, 0
      %p86 = por %p84, %p85
      %p87 = scmp.ne.s32.totalorder %s75, %s76
      %p88 = scmp.eq.s32.totalorder %s24, 1
      %p89 = por %p87, %p88
      %p91 = scmp.ne.s32.totalorder %s76, %s90
      %p92 = scmp.eq.s32.totalorder %s24, 0
      %p93 = por %p91, %p92
      %s95 = sadd.s32 %s94, 1
      %p98 = scmp.eq.s32.totalorder %s18, 1
      %p99 = scmp.ne.s32.totalorder %s94, %s96
      %p100 = scmp.eq.s32.totalorder %s18, 0
      %p101 = por %p99, %p100
      %p102 = scmp.ne.s32.totalorder %s94, %s96
      %p103 = scmp.eq.s32.totalorder %s23, 1
      %p104 = por %p102, %p103
      %p105 = scmp.ne.s32.totalorder %s96, %s97
      %p106 = scmp.eq.s32.totalorder %s23, 0
      %p107 = por %p105, %p106
      %p108 = scmp.ne.s32.totalorder %s96, %s97
      %p109 = scmp.eq.s32.totalorder %s24, 1
      %p110 = por %p108, %p109
      %p112 = scmp.ne.s32.totalorder %s97, %s111
      %p113 = scmp.eq.s32.totalorder %s24, 0
      %p114 = por %p112, %p113
      %s116 = sadd.s32 %s115, 1
      %p119 = scmp.eq.s32.totalorder %s18, 1
      %p120 = scmp.ne.s32.totalorder %s115, %s117
      %p121 = scmp.eq.s32.totalorder %s18, 0
      %p122 = por %p120, %p121
      %p123 = scmp.ne.s32.totalorder %s115, %s117
      %p124 = scmp.eq.s32.totalorder %s23, 1
      %p125 = por %p123, %p124
      %p126 = scmp.ne.s32.totalorder %s117, %s118
      %p127 = scmp.eq.s32.totalorder %s23, 0
      %p128 = por %p126, %p127
      %p129 = scmp.ne.s32.totalorder %s117, %s118
      %p130 = scmp.eq.s32.totalorder %s24, 1
      %p131 = por %p129, %p130
      %p133 = scmp.ne.s32.totalorder %s118, %s132
      %p134 = scmp.eq.s32.totalorder %s24, 0
      %p135 = por %p133, %p134
      %s136 = ssub.s32 %s18, %s25
      %p137 = scmp.eq.s32.totalorder %s136, 0
      %s139 = sadd.s32 %s138, 1
      %s140 = scalar_select %p137, %s138, %s139
      %p143 = pneg %p137
      %p144 = scmp.eq.s32.totalorder %s18, 1
      %p145 = por %p143, %p144
      %p146 = scmp.ne.s32.totalorder %s138, %s141
      %p147 = scmp.eq.s32.totalorder %s18, 0
      %p148 = por %p146, %p147
      %p149 = scmp.ne.s32.totalorder %s138, %s141
      %p150 = scmp.eq.s32.totalorder %s23, 1
      %p151 = por %p149, %p150
      %p152 = scmp.ne.s32.totalorder %s141, %s142
      %p153 = scmp.eq.s32.totalorder %s23, 0
      %p154 = por %p152, %p153
      %p155 = scmp.ne.s32.totalorder %s141, %s142
      %p156 = scmp.eq.s32.totalorder %s24, 1
      %p157 = por %p155, %p156
      %p159 = scmp.ne.s32.totalorder %s142, %s158
      %p160 = scmp.eq.s32.totalorder %s24, 0
      %p161 = por %p159, %p160
      %p162 = scmp.le.s32.totalorder 1, %s18
      %p163 = scmp.lt.s32.totalorder %s18, 3
      %p164 = pnand %p162, %p163
      %p165 = pneg %p164
      // Predicated region
      $region9: #{tpu_custom_call.1} parent=5 // pred_check
        _
      $region10: #{tpu_custom_call.1} parent=5 // pred_check_branch
        %167 = sbr.rel (%p164) target = $region12
      $region11: #{tpu_custom_call.1} parent=5 // pred_region
        %s168 = ssub.s32 %s18, 1
        // Predicated region
        $region13: #{tpu_custom_call.1} parent=11 // pred_check
          %p169 = pneg %p65
        $region14: #{tpu_custom_call.1} parent=11 // pred_check_branch
          %171 = sbr.rel (%p169) target = $region16
        $region15: #{tpu_custom_call.1} parent=11 // pred_region
          %173 = vsyncadd [#allocation7], 0
          %s174 = sshll.u32 %s1, 4
          %s175 = int_to_ptr.hbm [resolvable:$true] %s174
          %s176 = sshll.u32 [#allocation6], 4
          %s177 = int_to_ptr.vmem [resolvable:$true] %s176
          %182 = dma.hbm_to_vmem [thread:$0]  %s175, 256, %s177, [#allocation7], 64, 64, 4
        $region16: #{tpu_custom_call.1} parent=11 // pred_fallthru
          _
        // Predicated region
        $region17: #{tpu_custom_call.1} parent=11 // pred_check
          %p183 = pneg %p86
        $region18: #{tpu_custom_call.1} parent=11 // pred_check_branch
          %185 = sbr.rel (%p183) target = $region20
        $region19: #{tpu_custom_call.1} parent=11 // pred_region
          _
        $region20: #{tpu_custom_call.1} parent=11 // pred_fallthru
          _
        // Predicated region
        $region21: #{tpu_custom_call.1} parent=11 // pred_check
          %p186 = pneg %p107
        $region22: #{tpu_custom_call.1} parent=11 // pred_check_branch
          %188 = sbr.rel (%p186) target = $region24
        $region23: #{tpu_custom_call.1} parent=11 // pred_region
          %190 = vsyncadd [#allocation7], 0
          %s191 = sshll.u32 %s3, 4
          %s192 = int_to_ptr.hbm [resolvable:$true] %s191
          %s193 = sshll.u32 [#allocation8], 4
          %s194 = int_to_ptr.vmem [resolvable:$true] %s193
          %199 = dma.hbm_to_vmem [thread:$0]  %s192, 256, %s194, [#allocation7], 64, 64, 4
        $region24: #{tpu_custom_call.1} parent=11 // pred_fallthru
          _
        // Predicated region
        $region25: #{tpu_custom_call.1} parent=11 // pred_check
          %p200 = pneg %p128
        $region26: #{tpu_custom_call.1} parent=11 // pred_check_branch
          %202 = sbr.rel (%p200) target = $region28
        $region27: #{tpu_custom_call.1} parent=11 // pred_region
          _
        $region28: #{tpu_custom_call.1} parent=11 // pred_fallthru
          _
      $region12: #{tpu_custom_call.1} parent=5 // pred_fallthru
        _
      %p203 = scmp.lt.s32.totalorder %s18, 2
      // Predicated region
      $region29: #{tpu_custom_call.1} parent=5 // pred_check
        %p204 = pneg %p203
      $region30: #{tpu_custom_call.1} parent=5 // pred_check_branch
        %206 = sbr.rel (%p204) target = $region32
      $region31: #{tpu_custom_call.1} parent=5 // pred_region
        // Predicated region
        $region33: #{tpu_custom_call.1} parent=31 // pred_check
          %p207 = pneg %p38
        $region34: #{tpu_custom_call.1} parent=31 // pred_check_branch
          %209 = sbr.rel (%p207) target = $region36
        $region35: #{tpu_custom_call.1} parent=31 // pred_region
          %s210 = sand.u32 %s28, 1
          %s211 = scalar_lea.sflag [#allocation4], %s210
          %s212 = sand.u32 %s28, 1
          %s213 = smul.addr %s212, 4
          %s214 = scalar_lea.vmem [#allocation3], %s213
          %216 = vsyncadd %s211, 0
          %s217 = smul.addr %s18, 4
          %s218 = scalar_lea.hbm %s0, %s217
          %s220 = sshll.u32 %s218, 4
          %s221 = int_to_ptr.hbm [resolvable:$true] %s220
          %s222 = sshll.u32 %s214, 4
          %s223 = int_to_ptr.vmem [resolvable:$true] %s222
          %225 = dma.hbm_to_vmem [thread:$0]  %s221, 64, %s223, %s211
        $region36: #{tpu_custom_call.1} parent=31 // pred_fallthru
          _
      $region32: #{tpu_custom_call.1} parent=5 // pred_fallthru
        _
      %p226 = scmp.le.s32.totalorder 1, %s18
      %p227 = scmp.lt.s32.totalorder %s18, 3
      %p228 = pnand %p226, %p227
      %p229 = pneg %p228
      // Predicated region
      $region37: #{tpu_custom_call.1} parent=5 // pred_check
        _
      $region38: #{tpu_custom_call.1} parent=5 // pred_check_branch
        %231 = sbr.rel (%p228) target = $region40
      $region39: #{tpu_custom_call.1} parent=5 // pred_region
        %s232 = ssub.s32 %s18, 1
        %s233 = sand.u32 %s31, 1
        %s234 = scalar_lea.sflag [#allocation4], %s233
        %s235 = sand.u32 %s31, 1
        %s236 = smul.addr %s235, 4
        %s237 = scalar_lea.vmem [#allocation3], %s236
        // Predicated region
        $region41: #{tpu_custom_call.1} parent=39 // pred_check
          %p238 = pneg %p44
        $region42: #{tpu_custom_call.1} parent=39 // pred_check_branch
          %240 = sbr.rel (%p238) target = $region44
        $region43: #{tpu_custom_call.1} parent=39 // pred_region
          %242 = dma.done %s234, 64
        $region44: #{tpu_custom_call.1} parent=39 // pred_fallthru
          _
        // Predicated region
        $region45: #{tpu_custom_call.1} parent=39 // pred_check
          %p243 = pneg %p65
        $region46: #{tpu_custom_call.1} parent=39 // pred_check_branch
          %245 = sbr.rel (%p243) target = $region48
        $region47: #{tpu_custom_call.1} parent=39 // pred_region
          %247 = dma.done [#allocation7], 256
        $region48: #{tpu_custom_call.1} parent=39 // pred_fallthru
          _
        // Predicated region
        $region49: #{tpu_custom_call.1} parent=39 // pred_check
          %p248 = pneg %p107
        $region50: #{tpu_custom_call.1} parent=39 // pred_check_branch
          %250 = sbr.rel (%p248) target = $region52
        $region51: #{tpu_custom_call.1} parent=39 // pred_region
          %252 = dma.done [#allocation7], 256
        $region52: #{tpu_custom_call.1} parent=39 // pred_fallthru
          _
        %s253 = sand.u32 %s31, 1
        %s254 = scalar_lea.sflag [#allocation4], %s253
        %s255 = sand.u32 %s31, 1
        %s256 = smul.addr %s255, 4
        %s257 = scalar_lea.vmem [#allocation3], %s256
        %p258 = pneg %p44
        %p259 = pneg %p41
        %p260 = pneg %p65
        %p261 = pneg %p62
        %p262 = pneg %p86
        %p263 = pneg %p83
        %p264 = pneg %p107
        %p265 = pneg %p104
        %p266 = pneg %p128
        %p267 = pneg %p125
        %p268 = pneg %p154
        %p269 = pneg %p151
        %s270 = sand.u32 %s141, 1
        %s271 = scalar_lea.sflag [#allocation5], %s270
        %s272 = sand.u32 %s141, 1
        %s273 = smul.addr %s272, 8
        %s274 = scalar_lea.vmem [#allocation9], %s273
        %v276 = vld [vmem:[%s237] sm:$0xf]
        %v277 = vld [vmem:[#allocation6] sm:$0xf]
        %v278 = vld [vmem:[#allocation6 + $0x4] sm:$0xf]
        %v279 = vld [vmem:[#allocation6 + $0x8] sm:$0xf]
        %v280 = vld [vmem:[#allocation6 + $0xc] sm:$0xf]
        %v281 = vld [vmem:[%s2] sm:$0x1]
        %v283 = vperm.slane %v281, 0
        %v289 = vunpack.c.l.b16 %v277
        %v290 = vunpack.c.l.b16 %v278
        %v291 = vunpack.c.l.b16 %v279
        %v292 = vunpack.c.l.b16 %v280
        %v293 = vpack.c.b16 %v290, %v289
        %v294 = vpack.c.b16 %v292, %v291
        %vm297 = vcmask 261120
        %v299 = vsel %vm297, %v276, 0
        %301 = vmatpush.bf16.msra.mxu0 0
        %302 = vmatpush.bf16.msra.mxu0 0
        %303 = vmatpush.bf16.msra.mxu0 0
        %304 = vmatpush.bf16.msra.mxu0 0
        %305 = vmatpush.bf16.msra.mxu0 0
        %306 = vmatpush.bf16.msra.mxu0 0
        %307 = vmatpush.bf16.msra.mxu0 %v294
        %308 = vmatpush.bf16.msra.mxu0 %v293
        %309 = vmatmul.bf16.gmra.mxu0 %v299
        %v310 = vpop.f32.mrf.mxu0
        %v311 = vadd.f32 %v283, %v310
        %v312 = vpop.f32.mrf.mxu0
        %313 = vdwg.mxu0
        %v314 = vmul.f32 %v311, 0.17677669
        %v315 = vpack.c.bf16 %v314, %v314
        %v316 = vpack.c.bf16 %v311, %v311
        %v317 = vlaneseq
        %v318 = vshrl.u32 %v317, 7
        %v319 = vlaneseq
        %v320 = vand.u32 %v319, 127
        %vm321 = vcmp.ge.s32.totalorder %v318, %v320
        %v323 = vunpack.c.l.b16 %v316
        %v324 = vpack.c.b16 %v323, %v323
        %325 = vrot.lane.b32.xlu0 %v324, 96
        %v326 = vpop.permute.xlu0 %325
        %vm327 = vcmask 64512
        %v329 = vsel %vm327, %v315, 0
        %v332 = vsel %vm327, %v326, 0
        %334 = vmatpush.bf16.xpose.msra.mxu0 0
        %335 = vmatpush.bf16.xpose.msra.mxu0 0
        %336 = vmatpush.bf16.xpose.msra.mxu0 0
        %337 = vmatpush.bf16.xpose.msra.mxu0 0
        %338 = vmatpush.bf16.xpose.msra.mxu0 0
        %339 = vmatpush.bf16.xpose.msra.mxu0 0
        %340 = vmatpush.bf16.xpose.msra.mxu0 0
        %341 = vmatpush.bf16.xpose.msra.mxu0 %v332
        %342 = vmatmul.bf16.gmra.mxu0 %v329
        %v343 = vpop.f32.mrf.mxu0
        %v344 = vadd.f32 0.0, %v343
        %v345 = vpop.f32.mrf.mxu0
        %346 = vdwg.mxu0
        %v347 = vsel %vm321, %v344, -inf
        %v348 = vsel %vm327, %v347, -inf
        %349 = vmax.xlane.f32.xlu0 %v348
        %v350 = vpop.xlane.xlu0 %349
        %v351 = vsub.f32 %v347, %v350
        %v352 = vmul.f32 %v351, 1.442695
        %v353 = vpow.pop %v352
        %v354 = vsel %vm327, %v353, 0.0
        %355 = vadd.xlane.f32.xlu0 %v354
        %v356 = vpop.xlane.xlu0 %355
        %v357 = vpack.c.bf16 %v353, %v353
        %358 = vrot.lane.b32.xlu0 %v324, 64
        %v359 = vpop.permute.xlu0 %358
        %v361 = vsel %vm327, %v357, 0
        %vm363 = vcmask 1043456
        %v365 = vsel %vm363, %v359, 0
        %367 = vmatpush.bf16.msra.mxu0 0
        %368 = vmatpush.bf16.msra.mxu0 0
        %369 = vmatpush.bf16.msra.mxu0 0
        %370 = vmatpush.bf16.msra.mxu0 0
        %371 = vmatpush.bf16.msra.mxu0 0
        %372 = vmatpush.bf16.msra.mxu0 0
        %373 = vmatpush.bf16.msra.mxu0 0
        %374 = vmatpush.bf16.msra.mxu0 %v365
        %375 = vmatmul.bf16.gmra.mxu0 %v361
        %v376 = vpop.f32.mrf.mxu0
        %v377 = vadd.f32 0.0, %v376
        %v378 = vpop.f32.mrf.mxu0
        %379 = vdwg.mxu0
        %v380 = vrcp.pop %v356
        %v381 = vmul.f32 %v377, %v380
        %v382 = vpack.c.bf16 %v381, %v381
        %vm383 = vcmask 60416
        %384 = vst.msk [vmem:[#allocation2] sm:$0xf] %vm383, %v382
        %v386 = vunpack.c.l.b16 %v315
        %v387 = vpack.c.b16 %v386, %v386
        %388 = vrot.lane.b32.xlu0 %v387, 120
        %v389 = vpop.permute.xlu0 %388
        %390 = vrot.lane.b32.xlu0 %v324, 88
        %v391 = vpop.permute.xlu0 %390
        %v393 = vsel %vm327, %v389, 0
        %v396 = vsel %vm327, %v391, 0
        %398 = vmatpush.bf16.xpose.msra.mxu0 0
        %399 = vmatpush.bf16.xpose.msra.mxu0 0
        %400 = vmatpush.bf16.xpose.msra.mxu0 0
        %401 = vmatpush.bf16.xpose.msra.mxu0 0
        %402 = vmatpush.bf16.xpose.msra.mxu0 0
        %403 = vmatpush.bf16.xpose.msra.mxu0 0
        %404 = vmatpush.bf16.xpose.msra.mxu0 0
        %405 = vmatpush.bf16.xpose.msra.mxu0 %v396
        %406 = vmatmul.bf16.gmra.mxu0 %v393
        %v407 = vpop.f32.mrf.mxu0
        %v408 = vadd.f32 0.0, %v407
        %v409 = vpop.f32.mrf.mxu0
        %410 = vdwg.mxu0
        %v411 = vsel %vm321, %v408, -inf
        %v412 = vsel %vm327, %v411, -inf
        %413 = vmax.xlane.f32.xlu0 %v412
        %v414 = vpop.xlane.xlu0 %413
        %v415 = vsub.f32 %v411, %v414
        %v416 = vmul.f32 %v415, 1.442695
        %v417 = vpow.pop %v416
        %v418 = vsel %vm327, %v417, 0.0
        %419 = vadd.xlane.f32.xlu0 %v418
        %v420 = vpop.xlane.xlu0 %419
        %v421 = vpack.c.bf16 %v417, %v417
        %422 = vrot.lane.b32.xlu0 %v324, 56
        %v423 = vpop.permute.xlu0 %422
        %v425 = vsel %vm327, %v421, 0
        %v428 = vsel %vm363, %v423, 0
        %430 = vmatpush.bf16.msra.mxu0 0
        %431 = vmatpush.bf16.msra.mxu0 0
        %432 = vmatpush.bf16.msra.mxu0 0
        %433 = vmatpush.bf16.msra.mxu0 0
        %434 = vmatpush.bf16.msra.mxu0 0
        %435 = vmatpush.bf16.msra.mxu0 0
        %436 = vmatpush.bf16.msra.mxu0 0
        %437 = vmatpush.bf16.msra.mxu0 %v428
        %438 = vmatmul.bf16.gmra.mxu0 %v425
        %v439 = vpop.f32.mrf.mxu0
        %v440 = vadd.f32 0.0, %v439
        %v441 = vpop.f32.mrf.mxu0
        %442 = vdwg.mxu0
        %v443 = vrcp.pop %v420
        %v444 = vmul.f32 %v440, %v443
        %v445 = vpack.c.bf16 %v444, %v444
        %447 = vrot.lane.b32.xlu0 %v445, 8
        %v448 = vpop.permute.xlu0 %447
        %vm450 = vcmask 126016
        %451 = vst.msk [vmem:[#allocation2] sm:$0xf] %vm450, %v448
        %452 = vrot.lane.b32.xlu0 %v387, 112
        %v453 = vpop.permute.xlu0 %452
        %454 = vrot.lane.b32.xlu0 %v324, 80
        %v455 = vpop.permute.xlu0 %454
        %v457 = vsel %vm327, %v453, 0
        %v460 = vsel %vm327, %v455, 0
        %462 = vmatpush.bf16.xpose.msra.mxu0 0
        %463 = vmatpush.bf16.xpose.msra.mxu0 0
        %464 = vmatpush.bf16.xpose.msra.mxu0 0
        %465 = vmatpush.bf16.xpose.msra.mxu0 0
        %466 = vmatpush.bf16.xpose.msra.mxu0 0
        %467 = vmatpush.bf16.xpose.msra.mxu0 0
        %468 = vmatpush.bf16.xpose.msra.mxu0 0
        %469 = vmatpush.bf16.xpose.msra.mxu0 %v460
        %470 = vmatmul.bf16.gmra.mxu0 %v457
        %v471 = vpop.f32.mrf.mxu0
        %v472 = vadd.f32 0.0, %v471
        %v473 = vpop.f32.mrf.mxu0
        %474 = vdwg.mxu0
        %v475 = vsel %vm321, %v472, -inf
        %v476 = vsel %vm327, %v475, -inf
        %477 = vmax.xlane.f32.xlu0 %v476
        %v478 = vpop.xlane.xlu0 %477
        %v479 = vsub.f32 %v475, %v478
        %v480 = vmul.f32 %v479, 1.442695
        %v481 = vpow.pop %v480
        %v482 = vsel %vm327, %v481, 0.0
        %483 = vadd.xlane.f32.xlu0 %v482
        %v484 = vpop.xlane.xlu0 %483
        %v485 = vpack.c.bf16 %v481, %v481
        %486 = vrot.lane.b32.xlu0 %v324, 48
        %v487 = vpop.permute.xlu0 %486
        %v489 = vsel %vm327, %v485, 0
        %v492 = vsel %vm363, %v487, 0
        %494 = vmatpush.bf16.msra.mxu0 0
        %495 = vmatpush.bf16.msra.mxu0 0
        %496 = vmatpush.bf16.msra.mxu0 0
        %497 = vmatpush.bf16.msra.mxu0 0
        %498 = vmatpush.bf16.msra.mxu0 0
        %499 = vmatpush.bf16.msra.mxu0 0
        %500 = vmatpush.bf16.msra.mxu0 0
        %501 = vmatpush.bf16.msra.mxu0 %v492
        %502 = vmatmul.bf16.gmra.mxu0 %v489
        %v503 = vpop.f32.mrf.mxu0
        %v504 = vadd.f32 0.0, %v503
        %v505 = vpop.f32.mrf.mxu0
        %506 = vdwg.mxu0
        %v507 = vrcp.pop %v484
        %v508 = vmul.f32 %v504, %v507
        %v509 = vpack.c.bf16 %v508, %v508
        %511 = vrot.lane.b32.xlu0 %v509, 16
        %v512 = vpop.permute.xlu0 %511
        %vm514 = vcmask 191616
        %515 = vst.msk [vmem:[#allocation2] sm:$0xf] %vm514, %v512
        %516 = vrot.lane.b32.xlu0 %v387, 104
        %v517 = vpop.permute.xlu0 %516
        %518 = vrot.lane.b32.xlu0 %v324, 72
        %v519 = vpop.permute.xlu0 %518
        %v521 = vsel %vm327, %v517, 0
        %v524 = vsel %vm327, %v519, 0
        %526 = vmatpush.bf16.xpose.msra.mxu0 0
        %527 = vmatpush.bf16.xpose.msra.mxu0 0
        %528 = vmatpush.bf16.xpose.msra.mxu0 0
        %529 = vmatpush.bf16.xpose.msra.mxu0 0
        %530 = vmatpush.bf16.xpose.msra.mxu0 0
        %531 = vmatpush.bf16.xpose.msra.mxu0 0
        %532 = vmatpush.bf16.xpose.msra.mxu0 0
        %533 = vmatpush.bf16.xpose.msra.mxu0 %v524
        %534 = vmatmul.bf16.gmra.mxu0 %v521
        %v535 = vpop.f32.mrf.mxu0
        %v536 = vadd.f32 0.0, %v535
        %v537 = vpop.f32.mrf.mxu0
        %538 = vdwg.mxu0
        %v539 = vsel %vm321, %v536, -inf
        %v540 = vsel %vm327, %v539, -inf
        %541 = vmax.xlane.f32.xlu0 %v540
        %v542 = vpop.xlane.xlu0 %541
        %v543 = vsub.f32 %v539, %v542
        %v544 = vmul.f32 %v543, 1.442695
        %v545 = vpow.pop %v544
        %v546 = vsel %vm327, %v545, 0.0
        %547 = vadd.xlane.f32.xlu0 %v546
        %v548 = vpop.xlane.xlu0 %547
        %v549 = vpack.c.bf16 %v545, %v545
        %550 = vrot.lane.b32.xlu0 %v324, 40
        %v551 = vpop.permute.xlu0 %550
        %v553 = vsel %vm327, %v549, 0
        %v556 = vsel %vm363, %v551, 0
        %558 = vmatpush.bf16.msra.mxu0 0
        %559 = vmatpush.bf16.msra.mxu0 0
        %560 = vmatpush.bf16.msra.mxu0 0
        %561 = vmatpush.bf16.msra.mxu0 0
        %562 = vmatpush.bf16.msra.mxu0 0
        %563 = vmatpush.bf16.msra.mxu0 0
        %564 = vmatpush.bf16.msra.mxu0 0
        %565 = vmatpush.bf16.msra.mxu0 %v556
        %566 = vmatmul.bf16.gmra.mxu0 %v553
        %v567 = vpop.f32.mrf.mxu0
        %v568 = vadd.f32 0.0, %v567
        %v569 = vpop.f32.mrf.mxu0
        %570 = vdwg.mxu0
        %v571 = vrcp.pop %v548
        %v572 = vmul.f32 %v568, %v571
        %v573 = vpack.c.bf16 %v572, %v572
        %575 = vrot.lane.b32.xlu0 %v573, 24
        %v576 = vpop.permute.xlu0 %575
        %vm578 = vcmask 257216
        %579 = vst.msk [vmem:[#allocation2] sm:$0xf] %vm578, %v576
        %v580 = vld [vmem:[#allocation2] sm:$0xf]
        %v581 = vld [vmem:[#allocation8] sm:$0xf]
        %v582 = vld [vmem:[#allocation8 + $0x4] sm:$0xf]
        %v583 = vld [vmem:[#allocation8 + $0x8] sm:$0xf]
        %v584 = vld [vmem:[#allocation8 + $0xc] sm:$0xf]
        %v585 = vld [vmem:[%s4] sm:$0x1]
        %v587 = vperm.slane %v585, 0
        %v593 = vunpack.c.l.b16 %v581
        %v594 = vunpack.c.l.b16 %v582
        %v595 = vunpack.c.l.b16 %v583
        %v596 = vunpack.c.l.b16 %v584
        %v597 = vpack.c.b16 %v594, %v593
        %v598 = vpack.c.b16 %v596, %v595
        %v602 = vsel %vm297, %v580, 0
        %604 = vmatpush.bf16.msra.mxu0 0
        %605 = vmatpush.bf16.msra.mxu0 0
        %606 = vmatpush.bf16.msra.mxu0 0
        %607 = vmatpush.bf16.msra.mxu0 0
        %608 = vmatpush.bf16.msra.mxu0 0
        %609 = vmatpush.bf16.msra.mxu0 0
        %610 = vmatpush.bf16.msra.mxu0 %v598
        %611 = vmatpush.bf16.msra.mxu0 %v597
        %612 = vmatmul.bf16.gmra.mxu0 %v602
        %v613 = vpop.f32.mrf.mxu0
        %v614 = vadd.f32 %v587, %v613
        %v615 = vpop.f32.mrf.mxu0
        %616 = vdwg.mxu0
        %617 = vst.msk [vmem:[%s274] sm:$0xff] %vm297, %v614
        %s618 = sand.u32 %s141, 1
        %s619 = scalar_lea.sflag [#allocation5], %s618
        %s620 = sand.u32 %s141, 1
        %s621 = smul.addr %s620, 8
        %s622 = scalar_lea.vmem [#allocation9], %s621
        // Predicated region
        $region53: #{tpu_custom_call.1} parent=39 // pred_check
          %p623 = pneg %p151
        $region54: #{tpu_custom_call.1} parent=39 // pred_check_branch
          %625 = sbr.rel (%p623) target = $region56
        $region55: #{tpu_custom_call.1} parent=39 // pred_region
          %627 = vsyncadd %s619, 0
          %s628 = smul.addr %s23, 8
          %s629 = scalar_lea.hbm %s5, %s628
          %s631 = sshll.u32 %s622, 4
          %s632 = int_to_ptr.vmem [resolvable:$true] %s631
          %s633 = sshll.u32 %s629, 4
          %s634 = int_to_ptr.hbm [resolvable:$true] %s633
          %636 = dma.vmem_to_hbm [thread:$0]  %s632, 128, %s634, %s619
        $region56: #{tpu_custom_call.1} parent=39 // pred_fallthru
          _
      $region40: #{tpu_custom_call.1} parent=5 // pred_fallthru
        _
      %p637 = scmp.le.s32.totalorder 2, %s18
      // Predicated region
      $region57: #{tpu_custom_call.1} parent=5 // pred_check
        %p638 = pneg %p637
      $region58: #{tpu_custom_call.1} parent=5 // pred_check_branch
        %640 = sbr.rel (%p638) target = $region60
      $region59: #{tpu_custom_call.1} parent=5 // pred_region
        %s641 = ssub.s32 %s18, 2
        // Predicated region
        $region61: #{tpu_custom_call.1} parent=59 // pred_check
          %p642 = pneg %p157
        $region62: #{tpu_custom_call.1} parent=59 // pred_check_branch
          %644 = sbr.rel (%p642) target = $region64
        $region63: #{tpu_custom_call.1} parent=59 // pred_region
          %s645 = sand.u32 %s142, 1
          %s646 = scalar_lea.sflag [#allocation5], %s645
          %s647 = sand.u32 %s142, 1
          %s648 = smul.addr %s647, 8
          %s649 = scalar_lea.vmem [#allocation9], %s648
          %651 = dma.done %s646, 128
        $region64: #{tpu_custom_call.1} parent=59 // pred_fallthru
          _
      $region60: #{tpu_custom_call.1} parent=5 // pred_fallthru
        _
    $region6: #{tpu_custom_call.1} parent=1 // loop_footer
      %s22 = sadd.s32 1, %s18
    $region7: #{tpu_custom_call.1} parent=1 // loop_footer_branch
      %17 = sbr.rel target = $region3
    $region8: #{tpu_custom_call.1} parent=1 // loop_exit
      _
    %652 = vsyncpa [#allocation4], 1
    %s653 = scalar_lea.sflag [#allocation4], 1
    %654 = vsyncpa %s653, 1
    %655 = vsyncpa [#allocation7], 1
    %656 = vsyncpa [#allocation5], 1
    %s657 = scalar_lea.sflag [#allocation5], 1
    %658 = vsyncpa %s657, 1

</llo_original>
